<compile_context>
chip_gen: v6e
topology: v6e:2x2x1
jax: 0.10.0
libtpu: 0.0.40
codegen_flags: <defaults>
</compile_context>

<pallas_src>
import jax
import jax.numpy as jnp
from jax.experimental import pallas as pl
from jax.experimental.pallas import tpu as pltpu


def _round_up(v, m):
    return ((v + m - 1) // m) * m


def _vmem_budget_bytes():
    """Per-generation VMEM budget: half of physical VMEM (v5e/v6e 128 MiB, v7x 64 MiB)."""
    try:
        cap = int(pltpu.get_tpu_info().vmem_capacity_bytes)
    except Exception:
        cap = 64 * 1024 * 1024  # conservative fallback, safe on every generation
    return cap // 2


def _pick_tiles(M, D_in, D_out_p, cbytes, obytes, budget):
    """Pick the largest lane-dense (tm, tn): prefer a fully resident weight (big tn),
    then the biggest M tile that fits the VMEM budget with double buffering."""
    tm_cap = max(8, min(512, _round_up(M, 8)))
    tn_opts = sorted({D_out_p,
                      min(D_out_p, 512),
                      min(D_out_p, 256),
                      min(D_out_p, 128)}, reverse=True)
    tm_opts = [t for t in (512, 256, 128, 64, 32, 16, 8) if t <= tm_cap]
    for tn in tn_opts:
        for tm in tm_opts:
            use = (2 * tm * D_in * cbytes        # double-buffered x tile
                   + 2 * D_in * tn * cbytes      # weight tile (resident across inner axis)
                   + 2 * tm * tn * obytes        # double-buffered output tile
                   + 2 * tn * 4)                 # bias tile (f32)
            if use <= budget:
                return tm, tn
    return 8, min(D_out_p, 128)


def _gemm_bias_kernel(x_ref, w_ref, b_ref, o_ref):
    # x_ref: (tm, D_in)   centered set rows, compute dtype
    # w_ref: (D_in, tn)   Gamma weight (pre-transposed), compute dtype; constant over
    #                     the inner grid axis -> no re-DMA between M tiles
    # b_ref: (1, tn)      Gamma bias, f32
    # o_ref: (tm, tn)
    acc = jnp.dot(x_ref[...], w_ref[...], preferred_element_type=jnp.float32)  # MXU, f32 acc
    o_ref[...] = (acc + b_ref[...]).astype(o_ref.dtype)                        # one fused VPU add


def prepare_gamma_params(w_gamma, b_gamma, *, compute_dtype=jnp.bfloat16):
    """One-time parameter prep (transpose + cast + lane padding).

    Cache the result across calls when the layer is applied repeatedly so the
    D_in*D_out transpose/cast traffic is not paid per invocation.
    """
    D_out, D_in = w_gamma.shape
    D_out_p = _round_up(D_out, 128)
    w_t = jnp.transpose(w_gamma).astype(compute_dtype)            # (D_in, D_out)
    b = b_gamma.astype(jnp.float32)
    if D_out_p != D_out:
        w_t = jnp.pad(w_t, ((0, 0), (0, D_out_p - D_out)))
        b = jnp.pad(b, (0, D_out_p - D_out))
    return w_t, b.reshape(1, D_out_p)


def perm_equi1_mean(x, w_gamma, b_gamma, *, compute_dtype=jnp.bfloat16,
                    prepared=None, tm=None, tn=None):
    """PermEqui1_mean forward.

    x:       (B, N, D_in)
    w_gamma: (D_out, D_in)   PyTorch nn.Linear weight layout
    b_gamma: (D_out,)
    prepared: optional cached output of prepare_gamma_params (same compute_dtype)
    returns: (B, N, D_out) in x.dtype
    """
    B, N, D_in = x.shape
    D_out = w_gamma.shape[0]
    out_dtype = x.dtype

    if prepared is None:
        w_t, bias = prepare_gamma_params(w_gamma, b_gamma, compute_dtype=compute_dtype)
    else:
        w_t, bias = prepared
    D_out_p = w_t.shape[1]

    # Center BEFORE casting to the compute dtype: preserves relative precision of
    # the deviations under bf16 and makes the bias batch-independent. The mean is
    # accumulated in f32; the cast/sub fuse in XLA (no materialized f32 copy of x).
    xm = jnp.mean(x, axis=1, keepdims=True, dtype=jnp.float32)       # (B, 1, D_in)
    xc = (x.astype(jnp.float32) - xm).astype(compute_dtype)          # (B, N, D_in)
    M = B * N
    xc = xc.reshape(M, D_in)                                         # flatten (B, N) -> M

    cbytes = jnp.dtype(compute_dtype).itemsize
    obytes = jnp.dtype(out_dtype).itemsize
    budget = _vmem_budget_bytes()
    tm_auto, tn_auto = _pick_tiles(M, D_in, D_out_p, cbytes, obytes, budget)
    if tm is None:
        tm = tm_auto
    if tn is None:
        tn = tn_auto

    # j (D_out tiles) outermost => the weight block index changes slowest; with a
    # single j step (tn == D_out_p) the weight stays VMEM-resident for the whole grid.
    grid = (pl.cdiv(D_out_p, tn), pl.cdiv(M, tm))

    out = pl.pallas_call(
        _gemm_bias_kernel,
        out_shape=jax.ShapeDtypeStruct((M, D_out_p), out_dtype),
        grid_spec=pltpu.PrefetchScalarGridSpec(
            num_scalar_prefetch=0,
            grid=grid,
            in_specs=[
                pl.BlockSpec((tm, D_in), lambda j, i: (i, 0)),    # streaming centered x rows
                pl.BlockSpec((D_in, tn), lambda j, i: (0, j)),    # weight: constant over inner i
                pl.BlockSpec((1, tn), lambda j, i: (0, j)),       # bias: constant over inner i
            ],
            out_specs=pl.BlockSpec((tm, tn), lambda j, i: (i, j)),
        ),
        compiler_params=pltpu.CompilerParams(
            dimension_semantics=("parallel", "parallel"),   # shardable across TCs (v7x megacore)
            vmem_limit_bytes=budget,
        ),
    )(xc, w_t, bias)

    out = out.reshape(B, N, D_out_p)
    if D_out_p != D_out:
        out = out[:, :, :D_out]   # drop the lane padding
    return out


def perm_equi1_mean_ref(x, w_gamma, b_gamma):
    xm = jnp.mean(x, axis=1, keepdims=True)                          # (B, 1, D_in)
    return jnp.einsum("bnd,od->bno", x - xm, w_gamma) + b_gamma      # (B, N, D_out)


if __name__ == "__main__":
    key = jax.random.PRNGKey(0)
    keys = jax.random.split(key, 6)

    def run_case(B, N, D_in, D_out, kx, kw, kb):
        x = jax.random.normal(kx, (B, N, D_in), dtype=jnp.float32)
        bound = 1.0 / (D_in ** 0.5)
        w_gamma = jax.random.uniform(kw, (D_out, D_in), jnp.float32, -bound, bound)
        b_gamma = jax.random.uniform(kb, (D_out,), jnp.float32, -bound, bound)

        ref = perm_equi1_mean_ref(x, w_gamma, b_gamma)

        # f32 compute path: tight match.
        out_f32 = jax.block_until_ready(
            perm_equi1_mean(x, w_gamma, b_gamma, compute_dtype=jnp.float32))
        assert out_f32.shape == (B, N, D_out)
        assert jnp.allclose(out_f32, ref, atol=1e-4, rtol=1e-4)

        # bf16 compute path (MXU-native), using the cached/prepared weights.
        prep = prepare_gamma_params(w_gamma, b_gamma, compute_dtype=jnp.bfloat16)
        out_bf16 = jax.block_until_ready(
            perm_equi1_mean(x, w_gamma, b_gamma, prepared=prep))
        assert out_bf16.shape == (B, N, D_out)
        assert jnp.allclose(out_bf16, ref, atol=5e-2, rtol=5e-2)

    run_case(2, 8, 64, 128, keys[0], keys[1], keys[2])   # lane-aligned D_out
    run_case(2, 8, 32, 96, keys[3], keys[4], keys[5])    # D_out padded 96 -> 128 (lane-dense stores)

    print("KERNEL_OK")
</pallas_src>

<mosaic_0001>
module attributes {stable_mosaic.version = 11 : i64} {
  func.func @_gemm_bias_kernel(%arg0: i32, %arg1: i32, %arg2: memref<16x64xf32, #tpu.memory_space<vmem>>, %arg3: memref<64x128xf32, #tpu.memory_space<vmem>>, %arg4: memref<1x128xf32, #tpu.memory_space<vmem>>, %arg5: memref<16x128xf32, #tpu.memory_space<vmem>>) attributes {dimension_semantics = [#tpu.dimension_semantics<parallel>, #tpu.dimension_semantics<parallel>], iteration_bounds = array<i64: 1, 1>, scalar_prefetch = 0 : i64, scratch_operands = 0 : i64, tpu.core_type = #tpu.core_type<tc>, window_params = [{transform_indices = @transform_0, window_bounds = array<i64: 16, 64>}, {transform_indices = @transform_1, window_bounds = array<i64: 64, 128>}, {transform_indices = @transform_2, window_bounds = array<i64: 1, 128>}, {transform_indices = @transform_3, window_bounds = array<i64: 16, 128>}]} {
    %c0 = arith.constant 0 : index
    %c0_0 = arith.constant 0 : index
    %0 = vector.load %arg2[%c0, %c0_0] : memref<16x64xf32, #tpu.memory_space<vmem>>, vector<16x64xf32>
    %c0_1 = arith.constant 0 : index
    %c0_2 = arith.constant 0 : index
    %1 = vector.load %arg3[%c0_1, %c0_2] : memref<64x128xf32, #tpu.memory_space<vmem>>, vector<64x128xf32>
    %cst = arith.constant dense<0.000000e+00> : vector<16x128xf32>
    %2 = tpu.matmul %0, %1, %cst {dimension_numbers = #tpu.dot_dimension_numbers<[1], [0], [0], [1], [0, 0, 1, 1], [], []>} : vector<16x64xf32>, vector<64x128xf32>, vector<16x128xf32> -> vector<16x128xf32>
    %c0_3 = arith.constant 0 : index
    %c0_4 = arith.constant 0 : index
    %3 = vector.load %arg4[%c0_3, %c0_4] : memref<1x128xf32, #tpu.memory_space<vmem>>, vector<1x128xf32>
    %4 = vector.broadcast %3 : vector<1x128xf32> to vector<16x128xf32>
    %5 = arith.addf %2, %4 : vector<16x128xf32>
    %c0_5 = arith.constant 0 : index
    %c0_6 = arith.constant 0 : index
    %6 = vector.load %arg5[%c0_5, %c0_6] : memref<16x128xf32, #tpu.memory_space<vmem>>, vector<16x128xf32>
    tpu.vector_store %arg5[%c0_5, %c0_6], %5 {strides = array<i32>} : memref<16x128xf32, #tpu.memory_space<vmem>>, vector<16x128xf32>,
    return
  }
  func.func @transform_0(%arg0: i32, %arg1: i32) -> (i32, i32) {
    %c0_i32 = arith.constant 0 : i32
    %c0_i32_0 = arith.constant 0 : i32
    return %arg1, %c0_i32 : i32, i32
  }
  func.func @transform_1(%arg0: i32, %arg1: i32) -> (i32, i32) {
    %c0_i32 = arith.constant 0 : i32
    %c0_i32_0 = arith.constant 0 : i32
    return %c0_i32, %arg0 : i32, i32
  }
  func.func @transform_2(%arg0: i32, %arg1: i32) -> (i32, i32) {
    %c0_i32 = arith.constant 0 : i32
    %c0_i32_0 = arith.constant 0 : i32
    return %c0_i32, %arg0 : i32, i32
  }
  func.func @transform_3(%arg0: i32, %arg1: i32) -> (i32, i32) {
    %c0_i32 = arith.constant 0 : i32
    return %arg1, %arg0 : i32, i32
  }
}

</mosaic_0001>

<llo_original>
// kernel: tpu_custom_call.1
$region0: #{tpu_custom_call.1}
  #allocation0 [shape = 'u32[]', space=smem, size = 0x4, offset = 0x4, fixed_abs, tag = 'smem constant byte address 0x4 - core index']
  #allocation1 [shape = 'u32[144,128]{1,0:T(1,128)}', space=vmem, size = 0x12000, scoped, tag = 'internal scratch']
  %s0 = inlined_call_operand.hbm [shape: f32[16,64], index: 0, kind: input, shape index: {}]
  %s1 = inlined_call_operand.hbm [shape: f32[64,128], index: 1, kind: input, shape index: {}]
  %s2 = inlined_call_operand.vmem [shape: f32[1,128], index: 2, kind: input, shape index: {}]
  %s3 = inlined_call_operand.hbm [shape: f32[16,128], index: 3, kind: output, shape index: {}]
  %s4 = sld [smem:[#allocation0]]
  $region30: #{tpu_custom_call.1} parent=0
    _
  %s6 = ssub.s32 1, %s4
  %s7 = scalar_select 0, %s6, %s4
  $region1: #{tpu_custom_call.1} parent=0
    #allocation2 [shape = 'u8[8192]{0}', space=vmem, size = 0x2000, scoped, tag = 'input window, operand 0, single buffered']
    #allocation3 [shape = 's32[1]{0}', space=sflag, size = 0x4, scoped, tag = 'scoped memory for tpu_custom_call.1']
    #allocation4 [shape = 's32[1]{0}', space=sflag, size = 0x4, scoped, tag = 'scoped memory for tpu_custom_call.1']
    #allocation5 [shape = 'u8[32768]{0}', space=vmem, size = 0x8000, scoped, tag = 'input window, operand 1, single buffered']
    #allocation6 [shape = 's32[1]{0}', space=sflag, size = 0x4, scoped, tag = 'scoped memory for tpu_custom_call.1']
    #allocation7 [shape = 'u8[8192]{0}', space=vmem, size = 0x2000, scoped, tag = 'output window, operand 0, single buffered']
    %8 = vsyncpa [#allocation3], 0
    %9 = vsyncpa [#allocation6], 0
    %10 = vsyncpa [#allocation4], 0
    // Predicated region
    $region2: #{tpu_custom_call.1} parent=1 // pred_check
      _
    $region3: #{tpu_custom_call.1} parent=1 // pred_check_branch
      %12 = sbr.rel (0) target = $region5
    $region4: #{tpu_custom_call.1} parent=1 // pred_region
      %s14 = ssub.s32 256, 256
      %15 = vsyncadd [#allocation3], %s14
      %s16 = sshll.u32 [#allocation2], 4
      %s17 = int_to_ptr.vmem [resolvable:$true] %s16
      %22 = dma.hbm_to_vmem [thread:$0]  %s0, 256, %s17, [#allocation3], 128, 128, 8
    $region5: #{tpu_custom_call.1} parent=1 // pred_fallthru
      _
    // Predicated region
    $region6: #{tpu_custom_call.1} parent=1 // pred_check
      _
    $region7: #{tpu_custom_call.1} parent=1 // pred_check_branch
      %24 = sbr.rel (0) target = $region9
    $region8: #{tpu_custom_call.1} parent=1 // pred_region
      %s26 = ssub.s32 1024, 1024
      %27 = vsyncadd [#allocation6], %s26
      %s28 = sshll.u32 [#allocation5], 4
      %s29 = int_to_ptr.vmem [resolvable:$true] %s28
      %34 = dma.hbm_to_vmem [thread:$0]  %s1, 1024, %s29, [#allocation6], 128, 128, 8
    $region9: #{tpu_custom_call.1} parent=1 // pred_fallthru
      _
    // Predicated region
    $region10: #{tpu_custom_call.1} parent=1 // pred_check
      _
    $region11: #{tpu_custom_call.1} parent=1 // pred_check_branch
      %36 = sbr.rel (0) target = $region13
    $region12: #{tpu_custom_call.1} parent=1 // pred_region
      _
    $region13: #{tpu_custom_call.1} parent=1 // pred_fallthru
      _
    // Predicated region
    $region14: #{tpu_custom_call.1} parent=1 // pred_check
      _
    $region15: #{tpu_custom_call.1} parent=1 // pred_check_branch
      %38 = sbr.rel (0) target = $region17
    $region16: #{tpu_custom_call.1} parent=1 // pred_region
      %39 = dma.done [#allocation3], 256
    $region17: #{tpu_custom_call.1} parent=1 // pred_fallthru
      _
    // Predicated region
    $region18: #{tpu_custom_call.1} parent=1 // pred_check
      _
    $region19: #{tpu_custom_call.1} parent=1 // pred_check_branch
      %41 = sbr.rel (0) target = $region21
    $region20: #{tpu_custom_call.1} parent=1 // pred_region
      %42 = dma.done [#allocation6], 1024
    $region21: #{tpu_custom_call.1} parent=1 // pred_fallthru
      _
    %v43 = vld [vmem:[#allocation2] sm:$0xff]
    %v44 = vld [vmem:[#allocation2 + $0x8] sm:$0xff]
    %v45 = vld [vmem:[#allocation5] sm:$0xff]
    %v46 = vld [vmem:[#allocation5 + $0x8] sm:$0xff]
    %v47 = vld [vmem:[#allocation5 + $0x10] sm:$0xff]
    %v48 = vld [vmem:[#allocation5 + $0x18] sm:$0xff]
    %v49 = vld [vmem:[#allocation5 + $0x20] sm:$0xff]
    %v50 = vld [vmem:[#allocation5 + $0x28] sm:$0xff]
    %v51 = vld [vmem:[#allocation5 + $0x30] sm:$0xff]
    %v52 = vld [vmem:[#allocation5 + $0x38] sm:$0xff]
    %v53 = vld [vmem:[%s2] sm:$0x1]
    %v55 = vlaneseq
    %v56 = vshrl.u32 %v55, 7
    %v57 = vsub.s32 0, %v56
    %v58 = vrot.slane %v53, %v57
    %vm60 = vcmask 523264
    %v62 = vsel %vm60, %v43, 0
    %v65 = vsel %vm60, %v44, 0
    %67 = vmatprep.subr.mxu0 0.0
    %68 = vmatpush1.msra.mxu0 0.0
    %69 = vmatprep.subr.mxu0 0.0
    %70 = vmatpush1.msra.mxu0 0.0
    %71 = vmatprep.subr.mxu0 0.0
    %72 = vmatpush1.msra.mxu0 0.0
    %73 = vmatprep.subr.mxu0 0.0
    %74 = vmatpush1.msra.mxu0 0.0
    %75 = vmatprep.subr.mxu0 0.0
    %76 = vmatpush1.msra.mxu0 0.0
    %77 = vmatprep.subr.mxu0 0.0
    %78 = vmatpush1.msra.mxu0 0.0
    %79 = vmatprep.subr.mxu0 0.0
    %80 = vmatpush1.msra.mxu0 0.0
    %81 = vmatprep.subr.mxu0 0.0
    %82 = vmatpush1.msra.mxu0 0.0
    %83 = vmatprep.subr.mxu0 0.0
    %84 = vmatpush1.msra.mxu0 %v52
    %85 = vmatprep.subr.mxu0 0.0
    %86 = vmatpush1.msra.mxu0 %v51
    %87 = vmatprep.subr.mxu0 0.0
    %88 = vmatpush1.msra.mxu0 %v50
    %89 = vmatprep.subr.mxu0 0.0
    %90 = vmatpush1.msra.mxu0 %v49
    %91 = vmatprep.subr.mxu0 0.0
    %92 = vmatpush1.msra.mxu0 %v48
    %93 = vmatprep.subr.mxu0 0.0
    %94 = vmatpush1.msra.mxu0 %v47
    %95 = vmatprep.subr.mxu0 0.0
    %96 = vmatpush1.msra.mxu0 %v46
    %97 = vmatprep.subr.mxu0 0.0
    %98 = vmatpush1.msra.mxu0 %v45
    %99 = vmatprep.subr.mxu0 0.0
    %100 = vmatpush2.msra.mxu0 0.0
    %101 = vmatprep.subr.mxu0 0.0
    %102 = vmatpush2.msra.mxu0 0.0
    %103 = vmatprep.subr.mxu0 0.0
    %104 = vmatpush2.msra.mxu0 0.0
    %105 = vmatprep.subr.mxu0 0.0
    %106 = vmatpush2.msra.mxu0 0.0
    %107 = vmatprep.subr.mxu0 0.0
    %108 = vmatpush2.msra.mxu0 0.0
    %109 = vmatprep.subr.mxu0 0.0
    %110 = vmatpush2.msra.mxu0 0.0
    %111 = vmatprep.subr.mxu0 0.0
    %112 = vmatpush2.msra.mxu0 0.0
    %113 = vmatprep.subr.mxu0 0.0
    %114 = vmatpush2.msra.mxu0 0.0
    %115 = vmatprep.subr.mxu0 0.0
    %116 = vmatpush2.msra.mxu0 0.0
    %117 = vmatprep.subr.mxu0 0.0
    %118 = vmatpush2.msra.mxu0 0.0
    %119 = vmatprep.subr.mxu0 0.0
    %120 = vmatpush2.msra.mxu0 0.0
    %121 = vmatprep.subr.mxu0 0.0
    %122 = vmatpush2.msra.mxu0 0.0
    %123 = vmatprep.subr.mxu0 0.0
    %124 = vmatpush2.msra.mxu0 0.0
    %125 = vmatprep.subr.mxu0 0.0
    %126 = vmatpush2.msra.mxu0 0.0
    %127 = vmatprep.subr.mxu0 0.0
    %128 = vmatpush2.msra.mxu0 0.0
    %129 = vmatprep.subr.mxu0 0.0
    %130 = vmatpush2.msra.mxu0 0.0
    %131 = vmatprep.mubr.f32.mxu0 0.0
    %132 = vmatmul.mubr.f32.gmra.mxu0 %v62
    %v133 = vpop.f32.mrf.mxu0
    %v134 = vadd.f32 %v58, %v133
    %v135 = vpop.f32.mrf.mxu0
    %136 = vmatprep.mubr.f32.mxu0 0.0
    %137 = vmatmul.mubr.f32.gmra.mxu0 %v65
    %v138 = vpop.f32.mrf.mxu0
    %v139 = vadd.f32 %v58, %v138
    %v140 = vpop.f32.mrf.mxu0
    %141 = vdwg.mxu0
    %142 = vst [vmem:[#allocation7] sm:$0xff] %v134
    %143 = vst [vmem:[#allocation7 + $0x8] sm:$0xff] %v139
    // Predicated region
    $region22: #{tpu_custom_call.1} parent=1 // pred_check
      _
    $region23: #{tpu_custom_call.1} parent=1 // pred_check_branch
      %145 = sbr.rel (0) target = $region25
    $region24: #{tpu_custom_call.1} parent=1 // pred_region
      %s147 = ssub.s32 256, 256
      %148 = vsyncadd [#allocation4], %s147
      %s149 = sshll.u32 [#allocation7], 4
      %s150 = int_to_ptr.vmem [resolvable:$true] %s149
      %155 = dma.vmem_to_hbm [thread:$0]  %s150, 256, %s3, [#allocation4], 128, 128, 8
    $region25: #{tpu_custom_call.1} parent=1 // pred_fallthru
      _
    // Predicated region
    $region26: #{tpu_custom_call.1} parent=1 // pred_check
      _
    $region27: #{tpu_custom_call.1} parent=1 // pred_check_branch
      %157 = sbr.rel (0) target = $region29
    $region28: #{tpu_custom_call.1} parent=1 // pred_region
      %158 = dma.done [#allocation4], 256
    $region29: #{tpu_custom_call.1} parent=1 // pred_fallthru
      _
    %159 = vsyncpa [#allocation3], 1
    %160 = vsyncpa [#allocation6], 1
    %161 = vsyncpa [#allocation4], 1

</llo_original>
